<compile_context>
chip_gen: v7x
topology: tpu7x:2x2x1
jax: 0.10.0
libtpu: 0.0.40
codegen_flags: <defaults>
</compile_context>

<pallas_src>
import jax
import jax.numpy as jnp
from jax import lax
from jax.experimental import pallas as pl
from jax.experimental.pallas import tpu as pltpu

_LANE = 128


def _vmem_budget():
    """(vmem_limit_bytes, per-(in+out)-block-pair byte budget)."""
    try:
        cap = int(pltpu.get_tpu_info().vmem_capacity_bytes)
    except Exception:
        cap = 64 * 1024 * 1024                       # conservative: v7x physical VMEM
    vmem_limit = min(cap * 3 // 4, 100 * 1024 * 1024)  # ~96 MiB v5e/v6e, ~48 MiB v7x
    pair_budget = vmem_limit // 4                    # in+out blocks, double-buffered
    return vmem_limit, pair_budget


def _choose_tiles(rows, t_in, t_out, itemsize, pair_budget, need_pad,
                  chunk_threshold_bytes):
    """Pick (row_tile, col_tile, in_cols, grid_rows, grid_cols, chunked, read_cols)."""
    pack = 8 * max(1, 4 // itemsize)        # sublane packing: f32 8, bf16 16, int8/fp8 32

    # Columns the kernel actually reads per row: the trim path never touches the
    # discarded tail (only rounded up to a 128-lane boundary).
    read_cols = t_in if need_pad else min(t_in, pl.cdiv(t_out, _LANE) * _LANE)
    total_bytes = rows * (read_cols + t_out) * itemsize

    # ---- row tile ------------------------------------------------------------
    row_tile = rows if rows <= 512 else 512          # 512 is a pack multiple for all dtypes
    big = (total_bytes > chunk_threshold_bytes
           or row_tile * (read_cols + t_out) * itemsize > pair_budget)
    if big and rows >= 2 * pack:
        # >=2 row blocks: feeds both v7x TensorCores / adds pipeline steps.
        row_tile = min(row_tile, pl.cdiv(pl.cdiv(rows, 2), pack) * pack)
    grid_rows = pl.cdiv(rows, row_tile)

    # ---- column tile (over the OUTPUT last dim) --------------------------------
    chunked = False
    col_tile = t_out                                  # full width (legal: full array dim)
    in_cols = t_in if need_pad else min(t_in, pl.cdiv(t_out, _LANE) * _LANE)
    if big and t_out >= 2 * _LANE:
        # 128-lane-multiple chunks sized so one in+out block pair fills most of
        # the VMEM budget while still producing >= ~8 total grid steps.
        budget_cols = max(_LANE,
                          (pair_budget // (2 * row_tile * itemsize)) // _LANE * _LANE)
        want_col_steps = pl.cdiv(8, grid_rows)
        even_cols = max(_LANE, (t_out // want_col_steps) // _LANE * _LANE)
        cand = min(budget_cols, even_cols)
        if cand < t_out:
            chunked = True
            col_tile = cand
            in_cols = cand
    grid_cols = pl.cdiv(t_out, col_tile)

    return row_tile, col_tile, in_cols, grid_rows, grid_cols, chunked, read_cols


def _make_kernel(t_in, t_out, col_tile, in_cols, need_pad, chunked, dtype):
    """Static (trace-time) selection of the pad / trim / copy kernel body."""
    if need_pad and not chunked:
        def kernel(x_ref, o_ref):
            # Disjoint stores: data region written exactly once, zeros only in
            # the tail (avoids the full-width-zero + overlay double write).
            o_ref[:, :t_in] = x_ref[...]
            o_ref[:, t_in:] = jnp.zeros((o_ref.shape[0], t_out - t_in), dtype)
        return kernel

    if need_pad and chunked:
        def kernel(x_ref, o_ref):
            # One chunk may straddle the data/pad boundary: mask on the global
            # output column index. Pure-copy chunks -> mask all true; pure-pad
            # tail chunks -> the (clamped, already resident) input is ignored.
            c = pl.program_id(1)
            cols = c * col_tile + lax.broadcasted_iota(jnp.int32, o_ref.shape, 1)
            x = x_ref[...]
            o_ref[...] = jnp.where(cols < t_in, x, jnp.zeros_like(x))
        return kernel

    if in_cols == col_tile:
        def kernel(x_ref, o_ref):                     # trim / copy, aligned chunk
            o_ref[...] = x_ref[...]
        return kernel

    def kernel(x_ref, o_ref):                         # trim with unaligned remainder
        o_ref[...] = x_ref[:, :col_tile]
    return kernel


def _pad_or_trim_rows(x2, t_out, *, chunk_threshold_bytes):
    rows, t_in = x2.shape
    dtype = x2.dtype
    itemsize = jnp.dtype(dtype).itemsize
    need_pad = t_out > t_in

    vmem_limit, pair_budget = _vmem_budget()
    (row_tile, col_tile, in_cols, grid_rows, grid_cols,
     chunked, read_cols) = _choose_tiles(rows, t_in, t_out, itemsize,
                                         pair_budget, need_pad,
                                         chunk_threshold_bytes)

    if chunked:
        # Clamp the input block index so the all-zero pad-tail chunks keep
        # re-using the last valid input block (no extra HBM read traffic).
        max_in_blk = pl.cdiv(t_in, col_tile) - 1
        in_index_map = lambda r, c: (r, jnp.minimum(c, max_in_blk))
    else:
        in_index_map = lambda r, c: (r, 0)

    kernel = _make_kernel(t_in, t_out, col_tile, in_cols, need_pad, chunked, dtype)

    return pl.pallas_call(
        kernel,
        out_shape=jax.ShapeDtypeStruct((rows, t_out), dtype),
        grid=(grid_rows, grid_cols),
        in_specs=[pl.BlockSpec((row_tile, in_cols), in_index_map)],
        out_specs=pl.BlockSpec((row_tile, col_tile), lambda r, c: (r, c)),
        compiler_params=pltpu.CompilerParams(
            dimension_semantics=("parallel", "parallel"),
            vmem_limit_bytes=int(vmem_limit),
        ),
        cost_estimate=pl.CostEstimate(
            flops=0,
            transcendentals=0,
            bytes_accessed=int(rows * (read_cols + t_out) * itemsize),
        ),
    )(x2)


def trim_to_size(x_and_rate, seconds=None, sample_length=None,
                 chunk_threshold_bytes=4 * 1024 * 1024):
    """JAX / Pallas equivalent of TrimToSize.forward. Returns (x_out, sample_rate).

    `chunk_threshold_bytes`: problems smaller than this stay single-block
    (grid-step overhead would dominate); set to 0 to force the chunked path.
    """
    x, sample_rate = x_and_rate

    if seconds is not None:
        # TODO(synk): PyTorch uses the *runtime* sample_rate; a traced rate would
        # make the output length dynamic (not expressible in JAX/Pallas), so a
        # concrete (static) sample rate is required on this path.
        target_len = int(seconds * int(sample_rate))
    elif sample_length is not None:
        target_len = int(sample_length)
    else:
        raise ValueError("Either `seconds` or `sample_length` must be set.")

    # torch-style squeeze (drops all singleton dims) — metadata only.
    x = jnp.squeeze(x)
    if x.ndim == 0:
        x = x.reshape(1)
    t_in = x.shape[-1]
    t_out = target_len

    if t_out == t_in:                      # identity: no HBM round trip at all
        return x, sample_rate

    lead = x.shape[:-1]
    rows = 1
    for d in lead:
        rows *= d
    x2 = x.reshape(rows, t_in)

    out2 = _pad_or_trim_rows(x2, t_out, chunk_threshold_bytes=chunk_threshold_bytes)
    return out2.reshape(lead + (t_out,)), sample_rate


if __name__ == "__main__":
    key = jax.random.PRNGKey(0)
    sample_rate = 16000

    # --- pad, full-width (non-chunked) path: (1, 4, 100) -> (4, 128) ----------
    B, C, T = 1, 4, 100
    x = jax.random.normal(key, (B, C, T), dtype=jnp.float32)
    y, sr = trim_to_size((x, sample_rate), sample_length=128)
    y = jax.block_until_ready(y)
    ref = jnp.pad(jnp.squeeze(x), ((0, 0), (0, 128 - T)))
    assert y.shape == (C, 128) and y.dtype == x.dtype
    assert bool(jnp.array_equal(y, ref))
    assert int(sr) == sample_rate

    # --- trim, full-width path with narrowed read: (4, 100) -> (4, 64) --------
    y2, _ = trim_to_size((x, sample_rate), sample_length=64)
    y2 = jax.block_until_ready(y2)
    assert y2.shape == (C, 64)
    assert bool(jnp.array_equal(y2, jnp.squeeze(x)[:, :64]))

    # --- pad, column-chunked path (forced): (1, 8, 300) -> (8, 1024) ----------
    x3 = jax.random.normal(jax.random.PRNGKey(0), (1, 8, 300), dtype=jnp.float32)
    y3, _ = trim_to_size((x3, sample_rate), sample_length=1024,
                         chunk_threshold_bytes=0)
    y3 = jax.block_until_ready(y3)
    ref3 = jnp.pad(jnp.squeeze(x3), ((0, 0), (0, 1024 - 300)))
    assert y3.shape == (8, 1024)
    assert bool(jnp.array_equal(y3, ref3))

    # --- trim, column-chunked path (forced): (8, 1500) -> (8, 1024) -----------
    x4 = jax.random.normal(jax.random.PRNGKey(1), (8, 1500), dtype=jnp.float32)
    y4, _ = trim_to_size((x4, sample_rate), sample_length=1024,
                         chunk_threshold_bytes=0)
    y4 = jax.block_until_ready(y4)
    assert y4.shape == (8, 1024)
    assert bool(jnp.array_equal(y4, x4[:, :1024]))

    # --- bf16 pad path (dtype-aware sublane packing) ---------------------------
    x5 = jax.random.normal(jax.random.PRNGKey(2), (1, 4, 100), dtype=jnp.bfloat16)
    y5, _ = trim_to_size((x5, sample_rate), sample_length=128)
    y5 = jax.block_until_ready(y5)
    ref5 = jnp.pad(jnp.squeeze(x5), ((0, 0), (0, 28)))
    assert y5.dtype == jnp.bfloat16 and bool(jnp.array_equal(y5, ref5))

    # --- `seconds` path with a concrete (static) sample rate ------------------
    y6, _ = trim_to_size((x, 120), seconds=1)        # 1 s @ 120 Hz -> length 120
    y6 = jax.block_until_ready(y6)
    ref6 = jnp.pad(jnp.squeeze(x), ((0, 0), (0, 20)))
    assert y6.shape == (C, 120) and bool(jnp.array_equal(y6, ref6))

    print("KERNEL_OK")
</pallas_src>

<mosaic_0001>
module attributes {stable_mosaic.version = 11 : i64} {
  func.func @kernel(%arg0: i32, %arg1: i32, %arg2: memref<4x100xf32, #tpu.memory_space<vmem>>, %arg3: memref<4x128xf32, #tpu.memory_space<vmem>>) attributes {dimension_semantics = [#tpu.dimension_semantics<parallel>, #tpu.dimension_semantics<parallel>], iteration_bounds = array<i64: 1, 1>, scalar_prefetch = 0 : i64, scratch_operands = 0 : i64, tpu.core_type = #tpu.core_type<tc>, window_params = [{transform_indices = @transform_0, window_bounds = array<i64: 4, 100>}, {transform_indices = @transform_1, window_bounds = array<i64: 4, 128>}]} {
    %c0 = arith.constant 0 : index
    %c0_0 = arith.constant 0 : index
    %0 = vector.load %arg2[%c0, %c0_0] : memref<4x100xf32, #tpu.memory_space<vmem>>, vector<4x100xf32>
    %c0_1 = arith.constant 0 : index
    %c0_2 = arith.constant 0 : index
    %1 = vector.load %arg3[%c0_1, %c0_2] : memref<4x128xf32, #tpu.memory_space<vmem>>, vector<4x100xf32>
    tpu.vector_store %arg3[%c0_1, %c0_2], %0 {strides = array<i32>} : memref<4x128xf32, #tpu.memory_space<vmem>>, vector<4x100xf32>,
    %cst = arith.constant 0.000000e+00 : f32
    %2 = vector.broadcast %cst : f32 to vector<4x28xf32>
    %c0_3 = arith.constant 0 : index
    %c100 = arith.constant 100 : index
    %3 = vector.load %arg3[%c0_3, %c100] : memref<4x128xf32, #tpu.memory_space<vmem>>, vector<4x28xf32>
    tpu.vector_store %arg3[%c0_3, %c100], %2 {strides = array<i32>} : memref<4x128xf32, #tpu.memory_space<vmem>>, vector<4x28xf32>,
    return
  }
  func.func @transform_0(%arg0: i32, %arg1: i32) -> (i32, i32) {
    %c0_i32 = arith.constant 0 : i32
    %c0_i32_0 = arith.constant 0 : i32
    return %arg0, %c0_i32 : i32, i32
  }
  func.func @transform_1(%arg0: i32, %arg1: i32) -> (i32, i32) {
    %c0_i32 = arith.constant 0 : i32
    return %arg0, %arg1 : i32, i32
  }
}

</mosaic_0001>

<llo_original>
// kernel: tpu_custom_call.1
$region0: #{tpu_custom_call.1}
  #allocation0 [shape = 'u32[]', space=smem, size = 0x4, offset = 0x4, fixed_abs, tag = 'smem constant byte address 0x4 - core index']
  #allocation1 [shape = 'u32[144,128]{1,0:T(1,128)}', space=vmem, size = 0x12000, scoped, tag = 'internal scratch']
  %s0 = inlined_call_operand.hbm [shape: f32[4,100], index: 0, kind: input, shape index: {}]
  %s1 = inlined_call_operand.hbm [shape: f32[4,128], index: 1, kind: output, shape index: {}]
  %s2 = sld [smem:[#allocation0]]
  $region18: #{tpu_custom_call.1} parent=0
    _
  %s4 = ssub.s32 1, %s2
  %s5 = scalar_select 0, %s4, %s2
  $region1: #{tpu_custom_call.1} parent=0
    #allocation2 [shape = 'u8[2048]{0}', space=vmem, size = 0x800, scoped, tag = 'input window, operand 0, single buffered']
    #allocation3 [shape = 's32[1]{0}', space=sflag, size = 0x4, scoped, tag = 'scoped memory for tpu_custom_call.1']
    #allocation4 [shape = 's32[1]{0}', space=sflag, size = 0x4, scoped, tag = 'scoped memory for tpu_custom_call.1']
    #allocation5 [shape = 'u8[2048]{0}', space=vmem, size = 0x800, scoped, tag = 'output window, operand 0, single buffered']
    %6 = vsyncpa [#allocation3], 0
    %7 = vsyncpa [#allocation4], 0
    // Predicated region
    $region2: #{tpu_custom_call.1} parent=1 // pred_check
      _
    $region3: #{tpu_custom_call.1} parent=1 // pred_check_branch
      %9 = sbr.rel (0) target = $region5
    $region4: #{tpu_custom_call.1} parent=1 // pred_region
      %s11 = ssub.s32 64, 64
      %12 = vsyncadd [#allocation3], %s11
      %s14 = sshll.u32 [#allocation2], 4
      %s15 = int_to_ptr.vmem [resolvable:$true] %s14
      %17 = dma.hbm_to_vmem [thread:$0]  %s0, 64, %s15, [#allocation3]
    $region5: #{tpu_custom_call.1} parent=1 // pred_fallthru
      _
    // Predicated region
    $region6: #{tpu_custom_call.1} parent=1 // pred_check
      _
    $region7: #{tpu_custom_call.1} parent=1 // pred_check_branch
      %19 = sbr.rel (0) target = $region9
    $region8: #{tpu_custom_call.1} parent=1 // pred_region
      %20 = dma.done [#allocation3], 64
    $region9: #{tpu_custom_call.1} parent=1 // pred_fallthru
      _
    %v21 = vld [vmem:[#allocation2] sm:$0xf]
    %vm22 = vcmask 814080
    %23 = vst.msk [vmem:[#allocation5] sm:$0xf] %vm22, %v21
    %vm24 = vcmask 1044256
    %25 = vst.msk [vmem:[#allocation5] sm:$0xf] %vm24, 0.0
    // Predicated region
    $region10: #{tpu_custom_call.1} parent=1 // pred_check
      _
    $region11: #{tpu_custom_call.1} parent=1 // pred_check_branch
      %27 = sbr.rel (0) target = $region13
    $region12: #{tpu_custom_call.1} parent=1 // pred_region
      %s29 = ssub.s32 64, 64
      %30 = vsyncadd [#allocation4], %s29
      %s32 = sshll.u32 [#allocation5], 4
      %s33 = int_to_ptr.vmem [resolvable:$true] %s32
      %35 = dma.vmem_to_hbm [thread:$0]  %s33, 64, %s1, [#allocation4]
    $region13: #{tpu_custom_call.1} parent=1 // pred_fallthru
      _
    // Predicated region
    $region14: #{tpu_custom_call.1} parent=1 // pred_check
      _
    $region15: #{tpu_custom_call.1} parent=1 // pred_check_branch
      %37 = sbr.rel (0) target = $region17
    $region16: #{tpu_custom_call.1} parent=1 // pred_region
      %38 = dma.done [#allocation4], 64
    $region17: #{tpu_custom_call.1} parent=1 // pred_fallthru
      _
    %39 = vsyncpa [#allocation3], 1
    %40 = vsyncpa [#allocation4], 1

</llo_original>
